<compile_context>
chip_gen: v7x
topology: tpu7x:2x2x1
jax: 0.10.0
libtpu: 0.0.40
codegen_flags: <defaults>
</compile_context>

<pallas_src>
import functools

import jax
import jax.numpy as jnp
from jax.experimental import pallas as pl
from jax.experimental.pallas import tpu as pltpu

HIDDEN = 256


def _round_up(x, m):
    return ((x + m - 1) // m) * m


def f_phi_kernel(x_ref,                 # (tm, 256)   bf16
                 mask_ref,              # (tm, 256)   bf16 dropout scale {0, 2}
                 w1_ref, b1_ref,        # (256, 256) bf16, (1, 256) f32
                 w2_ref, b2_ref,        # (256, 256) bf16, (1, 256) f32
                 w3_ref, b3_ref,        # (256, Npad) bf16, (1, Npad) f32
                 o_ref):                # (tm, Npad)  f32
    # fc1 + relu  (bf16 operands, f32 accumulate)
    h = jnp.dot(x_ref[...], w1_ref[...],
                preferred_element_type=jnp.float32) + b1_ref[...]
    h = jnp.maximum(h, 0.0)

    # fc2 + relu
    h = jnp.dot(h.astype(jnp.bfloat16), w2_ref[...],
                preferred_element_type=jnp.float32) + b2_ref[...]
    h = jnp.maximum(h, 0.0)

    # dropout p=0.5: precomputed scale tile in {0.0, 2.0} -> single multiply
    h = h * mask_ref[...]

    # fc3 (no activation)
    out = jnp.dot(h.astype(jnp.bfloat16), w3_ref[...],
                  preferred_element_type=jnp.float32) + b3_ref[...]
    o_ref[...] = out.astype(o_ref.dtype)


def init_params(output_size, key=None, dtype=jnp.float32):
    """Deterministic init mimicking nn.Linear's U(-1/sqrt(fan_in), 1/sqrt(fan_in)).
    Weights are stored (in_features, out_features)."""
    if key is None:
        key = jax.random.PRNGKey(0)
    ks = jax.random.split(key, 6)
    bound = 1.0 / jnp.sqrt(jnp.asarray(HIDDEN, dtype))
    w1 = jax.random.uniform(ks[0], (HIDDEN, HIDDEN), dtype, -bound, bound)
    b1 = jax.random.uniform(ks[1], (1, HIDDEN), dtype, -bound, bound)
    w2 = jax.random.uniform(ks[2], (HIDDEN, HIDDEN), dtype, -bound, bound)
    b2 = jax.random.uniform(ks[3], (1, HIDDEN), dtype, -bound, bound)
    w3 = jax.random.uniform(ks[4], (HIDDEN, output_size), dtype, -bound, bound)
    b3 = jax.random.uniform(ks[5], (1, output_size), dtype, -bound, bound)
    return dict(w1=w1, b1=b1, w2=w2, b2=b2, w3=w3, b3=b3)


def sum_of_pairs_forward(inputs, params, dropout_key=None):
    """inputs: [batch, *, 256] -> returns [batch, *, output_size].

    Dropout is always applied (matches F.dropout's default training=True)."""
    if dropout_key is None:
        dropout_key = jax.random.PRNGKey(0)

    orig_lead = inputs.shape[:-1]
    assert inputs.shape[-1] == HIDDEN
    out_dtype = inputs.dtype

    x = inputs.reshape(-1, HIDDEN)
    M = x.shape[0]
    output_size = params["w3"].shape[1]

    # Row tiling: big tiles (up to 512 rows) amortize the ~0.35us/step overhead;
    # round to 16 so bf16 sublane packing is always respected.
    tm = min(512, _round_up(max(M, 16), 16))
    M_pad = _round_up(M, tm)

    # Cast matmul operands to bf16 once here (not per grid step).
    x = x.astype(jnp.bfloat16)
    if M_pad != M:
        x = jnp.pad(x, ((0, M_pad - M), (0, 0)))

    # Lane-pad the output dim to a multiple of 128 (zero-padded weight columns).
    N_pad = _round_up(output_size, 128)
    w1 = params["w1"].astype(jnp.bfloat16)
    w2 = params["w2"].astype(jnp.bfloat16)
    w3 = jnp.pad(params["w3"], ((0, 0), (0, N_pad - output_size))).astype(jnp.bfloat16)
    b1 = params["b1"].astype(jnp.float32)
    b2 = params["b2"].astype(jnp.float32)
    b3 = jnp.pad(params["b3"], ((0, 0), (0, N_pad - output_size))).astype(jnp.float32)

    # Dropout scale in {0.0, 2.0}: keep w.p. 0.5 and scale by 1/(1-p)=2.
    # Random stream depends only on dropout_key (not on tiling).
    keep = jax.random.bernoulli(dropout_key, 0.5, (M_pad, HIDDEN))
    mask = jnp.where(keep, 2.0, 0.0).astype(jnp.bfloat16)

    grid = (M_pad // tm,)
    rows = lambda i: (i, 0)      # row tiles
    full = lambda i: (0, 0)      # replicated (resident) weight/bias blocks

    flops = 2 * M_pad * (HIDDEN * HIDDEN * 2 + HIDDEN * N_pad)
    bytes_accessed = (
        M_pad * HIDDEN * 2 * 2                      # x + mask (bf16)
        + 2 * HIDDEN * HIDDEN * 2 + HIDDEN * N_pad * 2   # weights (bf16)
        + (2 * HIDDEN + N_pad) * 4                  # biases (f32)
        + M_pad * N_pad * 4                         # output (f32)
    )

    out_pad = pl.pallas_call(
        f_phi_kernel,
        out_shape=jax.ShapeDtypeStruct((M_pad, N_pad), out_dtype),
        grid=grid,
        in_specs=[
            pl.BlockSpec((tm, HIDDEN), rows),        # x
            pl.BlockSpec((tm, HIDDEN), rows),        # dropout mask
            pl.BlockSpec((HIDDEN, HIDDEN), full),    # w1
            pl.BlockSpec((1, HIDDEN), full),         # b1
            pl.BlockSpec((HIDDEN, HIDDEN), full),    # w2
            pl.BlockSpec((1, HIDDEN), full),         # b2
            pl.BlockSpec((HIDDEN, N_pad), full),     # w3
            pl.BlockSpec((1, N_pad), full),          # b3
        ],
        out_specs=pl.BlockSpec((tm, N_pad), rows),
        compiler_params=pltpu.CompilerParams(
            dimension_semantics=("parallel",)),      # row tiles are independent
        cost_estimate=pl.CostEstimate(
            flops=flops, transcendentals=0, bytes_accessed=bytes_accessed),
    )(x, mask, w1, b1, w2, b2, w3, b3)

    # Only pay the slice copy when padding actually happened.
    if M_pad != M or N_pad != output_size:
        out = out_pad[:M, :output_size]
    else:
        out = out_pad
    return out.reshape(*orig_lead, output_size)


if __name__ == "__main__":
    key = jax.random.PRNGKey(0)
    k_in, k_params, k_drop = jax.random.split(key, 3)

    batch, seq, output_size = 2, 8, 10
    inputs = jax.random.normal(k_in, (batch, seq, HIDDEN), dtype=jnp.float32)

    params = init_params(output_size, key=k_params)

    out = sum_of_pairs_forward(inputs, params, dropout_key=k_drop)
    out = jax.block_until_ready(out)

    assert out.shape == (batch, seq, output_size), out.shape
    assert out.dtype == jnp.float32
    assert bool(jnp.all(jnp.isfinite(out)))
    print("KERNEL_OK")
</pallas_src>

<mosaic_0001>
module attributes {stable_mosaic.version = 11 : i64} {
  func.func @f_phi_kernel(%arg0: i32, %arg1: memref<16x256xbf16, #tpu.memory_space<vmem>>, %arg2: memref<16x256xbf16, #tpu.memory_space<vmem>>, %arg3: memref<256x256xbf16, #tpu.memory_space<vmem>>, %arg4: memref<1x256xf32, #tpu.memory_space<vmem>>, %arg5: memref<256x256xbf16, #tpu.memory_space<vmem>>, %arg6: memref<1x256xf32, #tpu.memory_space<vmem>>, %arg7: memref<256x128xbf16, #tpu.memory_space<vmem>>, %arg8: memref<1x128xf32, #tpu.memory_space<vmem>>, %arg9: memref<16x128xf32, #tpu.memory_space<vmem>>) attributes {dimension_semantics = [#tpu.dimension_semantics<parallel>], iteration_bounds = array<i64: 1>, scalar_prefetch = 0 : i64, scratch_operands = 0 : i64, tpu.core_type = #tpu.core_type<tc>, window_params = [{transform_indices = @transform_0, window_bounds = array<i64: 16, 256>}, {transform_indices = @transform_1, window_bounds = array<i64: 16, 256>}, {pipeline_mode = #tpu.pipeline_mode<synchronous>, transform_indices = @transform_2, window_bounds = array<i64: 256, 256>}, {pipeline_mode = #tpu.pipeline_mode<synchronous>, transform_indices = @transform_3, window_bounds = array<i64: 1, 256>}, {pipeline_mode = #tpu.pipeline_mode<synchronous>, transform_indices = @transform_4, window_bounds = array<i64: 256, 256>}, {pipeline_mode = #tpu.pipeline_mode<synchronous>, transform_indices = @transform_5, window_bounds = array<i64: 1, 256>}, {pipeline_mode = #tpu.pipeline_mode<synchronous>, transform_indices = @transform_6, window_bounds = array<i64: 256, 128>}, {pipeline_mode = #tpu.pipeline_mode<synchronous>, transform_indices = @transform_7, window_bounds = array<i64: 1, 128>}, {transform_indices = @transform_8, window_bounds = array<i64: 16, 128>}]} {
    %c0 = arith.constant 0 : index
    %c0_0 = arith.constant 0 : index
    %0 = vector.load %arg1[%c0, %c0_0] : memref<16x256xbf16, #tpu.memory_space<vmem>>, vector<16x256xbf16>
    %c0_1 = arith.constant 0 : index
    %c0_2 = arith.constant 0 : index
    %1 = vector.load %arg3[%c0_1, %c0_2] : memref<256x256xbf16, #tpu.memory_space<vmem>>, vector<256x256xbf16>
    %cst = arith.constant dense<0.000000e+00> : vector<16x256xf32>
    %2 = tpu.matmul %0, %1, %cst {dimension_numbers = #tpu.dot_dimension_numbers<[1], [0], [0], [1], [0, 0, 1, 1], [], []>} : vector<16x256xbf16>, vector<256x256xbf16>, vector<16x256xf32> -> vector<16x256xf32>
    %c0_3 = arith.constant 0 : index
    %c0_4 = arith.constant 0 : index
    %3 = vector.load %arg4[%c0_3, %c0_4] : memref<1x256xf32, #tpu.memory_space<vmem>>, vector<1x256xf32>
    %4 = vector.broadcast %3 : vector<1x256xf32> to vector<16x256xf32>
    %5 = arith.addf %2, %4 : vector<16x256xf32>
    %cst_5 = arith.constant 0.000000e+00 : f32
    %6 = vector.broadcast %cst_5 : f32 to vector<16x256xf32>
    %7 = arith.maximumf %5, %6 : vector<16x256xf32>
    %8 = arith.truncf %7 : vector<16x256xf32> to vector<16x256xbf16>
    %c0_6 = arith.constant 0 : index
    %c0_7 = arith.constant 0 : index
    %9 = vector.load %arg5[%c0_6, %c0_7] : memref<256x256xbf16, #tpu.memory_space<vmem>>, vector<256x256xbf16>
    %cst_8 = arith.constant dense<0.000000e+00> : vector<16x256xf32>
    %10 = tpu.matmul %8, %9, %cst_8 {dimension_numbers = #tpu.dot_dimension_numbers<[1], [0], [0], [1], [0, 0, 1, 1], [], []>} : vector<16x256xbf16>, vector<256x256xbf16>, vector<16x256xf32> -> vector<16x256xf32>
    %c0_9 = arith.constant 0 : index
    %c0_10 = arith.constant 0 : index
    %11 = vector.load %arg6[%c0_9, %c0_10] : memref<1x256xf32, #tpu.memory_space<vmem>>, vector<1x256xf32>
    %12 = vector.broadcast %11 : vector<1x256xf32> to vector<16x256xf32>
    %13 = arith.addf %10, %12 : vector<16x256xf32>
    %cst_11 = arith.constant 0.000000e+00 : f32
    %14 = vector.broadcast %cst_11 : f32 to vector<16x256xf32>
    %15 = arith.maximumf %13, %14 : vector<16x256xf32>
    %c0_12 = arith.constant 0 : index
    %c0_13 = arith.constant 0 : index
    %16 = vector.load %arg2[%c0_12, %c0_13] : memref<16x256xbf16, #tpu.memory_space<vmem>>, vector<16x256xbf16>
    %17 = arith.extf %16 : vector<16x256xbf16> to vector<16x256xf32>
    %18 = arith.mulf %15, %17 : vector<16x256xf32>
    %19 = arith.truncf %18 : vector<16x256xf32> to vector<16x256xbf16>
    %c0_14 = arith.constant 0 : index
    %c0_15 = arith.constant 0 : index
    %20 = vector.load %arg7[%c0_14, %c0_15] : memref<256x128xbf16, #tpu.memory_space<vmem>>, vector<256x128xbf16>
    %cst_16 = arith.constant dense<0.000000e+00> : vector<16x128xf32>
    %21 = tpu.matmul %19, %20, %cst_16 {dimension_numbers = #tpu.dot_dimension_numbers<[1], [0], [0], [1], [0, 0, 1, 1], [], []>} : vector<16x256xbf16>, vector<256x128xbf16>, vector<16x128xf32> -> vector<16x128xf32>
    %c0_17 = arith.constant 0 : index
    %c0_18 = arith.constant 0 : index
    %22 = vector.load %arg8[%c0_17, %c0_18] : memref<1x128xf32, #tpu.memory_space<vmem>>, vector<1x128xf32>
    %23 = vector.broadcast %22 : vector<1x128xf32> to vector<16x128xf32>
    %24 = arith.addf %21, %23 : vector<16x128xf32>
    %c0_19 = arith.constant 0 : index
    %c0_20 = arith.constant 0 : index
    %25 = vector.load %arg9[%c0_19, %c0_20] : memref<16x128xf32, #tpu.memory_space<vmem>>, vector<16x128xf32>
    tpu.vector_store %arg9[%c0_19, %c0_20], %24 {strides = array<i32>} : memref<16x128xf32, #tpu.memory_space<vmem>>, vector<16x128xf32>,
    return
  }
  func.func @transform_0(%arg0: i32) -> (i32, i32) {
    %c0_i32 = arith.constant 0 : i32
    %c0_i32_0 = arith.constant 0 : i32
    return %arg0, %c0_i32 : i32, i32
  }
  func.func @transform_1(%arg0: i32) -> (i32, i32) {
    %c0_i32 = arith.constant 0 : i32
    %c0_i32_0 = arith.constant 0 : i32
    return %arg0, %c0_i32 : i32, i32
  }
  func.func @transform_2(%arg0: i32) -> (i32, i32) {
    %c0_i32 = arith.constant 0 : i32
    %c0_i32_0 = arith.constant 0 : i32
    %c0_i32_1 = arith.constant 0 : i32
    return %c0_i32, %c0_i32_0 : i32, i32
  }
  func.func @transform_3(%arg0: i32) -> (i32, i32) {
    %c0_i32 = arith.constant 0 : i32
    %c0_i32_0 = arith.constant 0 : i32
    %c0_i32_1 = arith.constant 0 : i32
    return %c0_i32, %c0_i32_0 : i32, i32
  }
  func.func @transform_4(%arg0: i32) -> (i32, i32) {
    %c0_i32 = arith.constant 0 : i32
    %c0_i32_0 = arith.constant 0 : i32
    %c0_i32_1 = arith.constant 0 : i32
    return %c0_i32, %c0_i32_0 : i32, i32
  }
  func.func @transform_5(%arg0: i32) -> (i32, i32) {
    %c0_i32 = arith.constant 0 : i32
    %c0_i32_0 = arith.constant 0 : i32
    %c0_i32_1 = arith.constant 0 : i32
    return %c0_i32, %c0_i32_0 : i32, i32
  }
  func.func @transform_6(%arg0: i32) -> (i32, i32) {
    %c0_i32 = arith.constant 0 : i32
    %c0_i32_0 = arith.constant 0 : i32
    %c0_i32_1 = arith.constant 0 : i32
    return %c0_i32, %c0_i32_0 : i32, i32
  }
  func.func @transform_7(%arg0: i32) -> (i32, i32) {
    %c0_i32 = arith.constant 0 : i32
    %c0_i32_0 = arith.constant 0 : i32
    %c0_i32_1 = arith.constant 0 : i32
    return %c0_i32, %c0_i32_0 : i32, i32
  }
  func.func @transform_8(%arg0: i32) -> (i32, i32) {
    %c0_i32 = arith.constant 0 : i32
    %c0_i32_0 = arith.constant 0 : i32
    return %arg0, %c0_i32 : i32, i32
  }
}

</mosaic_0001>

<llo_original>
// kernel: tpu_custom_call.1
$region0: #{tpu_custom_call.1}
  #allocation0 [shape = 'u32[]', space=smem, size = 0x4, offset = 0x4, fixed_abs, tag = 'smem constant byte address 0x4 - core index']
  #allocation1 [shape = 'u32[144,128]{1,0:T(1,128)}', space=vmem, size = 0x12000, scoped, tag = 'internal scratch']
  %s0 = inlined_call_operand.hbm [shape: bf16[16,256], index: 0, kind: input, shape index: {}]
  %s1 = inlined_call_operand.hbm [shape: bf16[16,256], index: 1, kind: input, shape index: {}]
  %s2 = inlined_call_operand.hbm [shape: bf16[256,256], index: 2, kind: input, shape index: {}]
  %s3 = inlined_call_operand.vmem [shape: f32[1,256], index: 3, kind: input, shape index: {}]
  %s4 = inlined_call_operand.hbm [shape: bf16[256,256], index: 4, kind: input, shape index: {}]
  %s5 = inlined_call_operand.vmem [shape: f32[1,256], index: 5, kind: input, shape index: {}]
  %s6 = inlined_call_operand.hbm [shape: bf16[256,128], index: 6, kind: input, shape index: {}]
  %s7 = inlined_call_operand.vmem [shape: f32[1,128], index: 7, kind: input, shape index: {}]
  %s8 = inlined_call_operand.hbm [shape: f32[16,128], index: 8, kind: output, shape index: {}]
  %s9 = sld [smem:[#allocation0]]
  $region62: #{tpu_custom_call.1} parent=0
    _
  %s11 = ssub.s32 1, %s9
  %s12 = scalar_select 0, %s11, %s9
  $region1: #{tpu_custom_call.1} parent=0
    #allocation2 [shape = 'u8[8192]{0}', space=vmem, size = 0x2000, scoped, tag = 'input window, operand 0, single buffered']
    #allocation3 [shape = 's32[1]{0}', space=sflag, size = 0x4, scoped, tag = 'scoped memory for tpu_custom_call.1']
    #allocation4 [shape = 's32[1]{0}', space=sflag, size = 0x4, scoped, tag = 'scoped memory for tpu_custom_call.1']
    #allocation5 [shape = 'u8[8192]{0}', space=vmem, size = 0x2000, scoped, tag = 'input window, operand 1, single buffered']
    #allocation6 [shape = 's32[1]{0}', space=sflag, size = 0x4, scoped, tag = 'scoped memory for tpu_custom_call.1']
    #allocation7 [shape = 'u8[131072]{0}', space=vmem, size = 0x20000, scoped, tag = 'input window, operand 2, single buffered']
    #allocation8 [shape = 'u8[131072]{0}', space=vmem, size = 0x20000, scoped, tag = 'input window, operand 4, single buffered']
    #allocation9 [shape = 's32[1]{0}', space=sflag, size = 0x4, scoped, tag = 'scoped memory for tpu_custom_call.1']
    #allocation10 [shape = 'u8[65536]{0}', space=vmem, size = 0x10000, scoped, tag = 'input window, operand 6, single buffered']
    #allocation11 [shape = 'u8[8192]{0}', space=vmem, size = 0x2000, scoped, tag = 'output window, operand 0, single buffered']
    %13 = vsyncpa [#allocation3], 0
    %14 = vsyncpa [#allocation6], 0
    %15 = vsyncpa [#allocation9], 0
    %16 = vsyncpa [#allocation4], 0
    // Predicated region
    $region2: #{tpu_custom_call.1} parent=1 // pred_check
      _
    $region3: #{tpu_custom_call.1} parent=1 // pred_check_branch
      %18 = sbr.rel (0) target = $region5
    $region4: #{tpu_custom_call.1} parent=1 // pred_region
      %s20 = ssub.s32 256, 256
      %21 = vsyncadd [#allocation3], %s20
      %s22 = sshll.u32 [#allocation2], 4
      %s23 = int_to_ptr.vmem [resolvable:$true] %s22
      %28 = dma.hbm_to_vmem [thread:$0]  %s0, 256, %s23, [#allocation3], 128, 128, 8
    $region5: #{tpu_custom_call.1} parent=1 // pred_fallthru
      _
    // Predicated region
    $region6: #{tpu_custom_call.1} parent=1 // pred_check
      _
    $region7: #{tpu_custom_call.1} parent=1 // pred_check_branch
      %30 = sbr.rel (0) target = $region9
    $region8: #{tpu_custom_call.1} parent=1 // pred_region
      %s32 = ssub.s32 256, 256
      %33 = vsyncadd [#allocation6], %s32
      %s34 = sshll.u32 [#allocation5], 4
      %s35 = int_to_ptr.vmem [resolvable:$true] %s34
      %40 = dma.hbm_to_vmem [thread:$0]  %s1, 256, %s35, [#allocation6], 128, 128, 8
    $region9: #{tpu_custom_call.1} parent=1 // pred_fallthru
      _
    // Predicated region
    $region10: #{tpu_custom_call.1} parent=1 // pred_check
      _
    $region11: #{tpu_custom_call.1} parent=1 // pred_check_branch
      %42 = sbr.rel (0) target = $region13
    $region12: #{tpu_custom_call.1} parent=1 // pred_region
      %s44 = ssub.s32 4096, 4096
      %45 = vsyncadd [#allocation6], %s44
      %s46 = sshll.u32 [#allocation7], 4
      %s47 = int_to_ptr.vmem [resolvable:$true] %s46
      %52 = dma.hbm_to_vmem [thread:$0]  %s2, 4096, %s47, [#allocation6], 128, 128, 8
    $region13: #{tpu_custom_call.1} parent=1 // pred_fallthru
      _
    // Predicated region
    $region14: #{tpu_custom_call.1} parent=1 // pred_check
      _
    $region15: #{tpu_custom_call.1} parent=1 // pred_check_branch
      %54 = sbr.rel (0) target = $region17
    $region16: #{tpu_custom_call.1} parent=1 // pred_region
      _
    $region17: #{tpu_custom_call.1} parent=1 // pred_fallthru
      _
    // Predicated region
    $region18: #{tpu_custom_call.1} parent=1 // pred_check
      _
    $region19: #{tpu_custom_call.1} parent=1 // pred_check_branch
      %56 = sbr.rel (0) target = $region21
    $region20: #{tpu_custom_call.1} parent=1 // pred_region
      %s58 = ssub.s32 4096, 4096
      %59 = vsyncadd [#allocation9], %s58
      %s60 = sshll.u32 [#allocation8], 4
      %s61 = int_to_ptr.vmem [resolvable:$true] %s60
      %66 = dma.hbm_to_vmem [thread:$0]  %s4, 4096, %s61, [#allocation9], 128, 128, 8
    $region21: #{tpu_custom_call.1} parent=1 // pred_fallthru
      _
    // Predicated region
    $region22: #{tpu_custom_call.1} parent=1 // pred_check
      _
    $region23: #{tpu_custom_call.1} parent=1 // pred_check_branch
      %68 = sbr.rel (0) target = $region25
    $region24: #{tpu_custom_call.1} parent=1 // pred_region
      _
    $region25: #{tpu_custom_call.1} parent=1 // pred_fallthru
      _
    // Predicated region
    $region26: #{tpu_custom_call.1} parent=1 // pred_check
      _
    $region27: #{tpu_custom_call.1} parent=1 // pred_check_branch
      %70 = sbr.rel (0) target = $region29
    $region28: #{tpu_custom_call.1} parent=1 // pred_region
      %s72 = ssub.s32 2048, 2048
      %73 = vsyncadd [#allocation9], %s72
      %s74 = sshll.u32 [#allocation10], 4
      %s75 = int_to_ptr.vmem [resolvable:$true] %s74
      %80 = dma.hbm_to_vmem [thread:$0]  %s6, 2048, %s75, [#allocation9], 64, 64, 4
    $region29: #{tpu_custom_call.1} parent=1 // pred_fallthru
      _
    // Predicated region
    $region30: #{tpu_custom_call.1} parent=1 // pred_check
      _
    $region31: #{tpu_custom_call.1} parent=1 // pred_check_branch
      %82 = sbr.rel (0) target = $region33
    $region32: #{tpu_custom_call.1} parent=1 // pred_region
      _
    $region33: #{tpu_custom_call.1} parent=1 // pred_fallthru
      _
    // Predicated region
    $region34: #{tpu_custom_call.1} parent=1 // pred_check
      _
    $region35: #{tpu_custom_call.1} parent=1 // pred_check_branch
      %84 = sbr.rel (0) target = $region37
    $region36: #{tpu_custom_call.1} parent=1 // pred_region
      %85 = dma.done [#allocation3], 256
    $region37: #{tpu_custom_call.1} parent=1 // pred_fallthru
      _
    // Predicated region
    $region38: #{tpu_custom_call.1} parent=1 // pred_check
      _
    $region39: #{tpu_custom_call.1} parent=1 // pred_check_branch
      %87 = sbr.rel (0) target = $region41
    $region40: #{tpu_custom_call.1} parent=1 // pred_region
      %88 = dma.done [#allocation6], 256
    $region41: #{tpu_custom_call.1} parent=1 // pred_fallthru
      _
    // Predicated region
    $region42: #{tpu_custom_call.1} parent=1 // pred_check
      _
    $region43: #{tpu_custom_call.1} parent=1 // pred_check_branch
      %90 = sbr.rel (0) target = $region45
    $region44: #{tpu_custom_call.1} parent=1 // pred_region
      %91 = dma.done [#allocation6], 4096
    $region45: #{tpu_custom_call.1} parent=1 // pred_fallthru
      _
    // Predicated region
    $region46: #{tpu_custom_call.1} parent=1 // pred_check
      _
    $region47: #{tpu_custom_call.1} parent=1 // pred_check_branch
      %93 = sbr.rel (0) target = $region49
    $region48: #{tpu_custom_call.1} parent=1 // pred_region
      %94 = dma.done [#allocation9], 4096
    $region49: #{tpu_custom_call.1} parent=1 // pred_fallthru
      _
    // Predicated region
    $region50: #{tpu_custom_call.1} parent=1 // pred_check
      _
    $region51: #{tpu_custom_call.1} parent=1 // pred_check_branch
      %96 = sbr.rel (0) target = $region53
    $region52: #{tpu_custom_call.1} parent=1 // pred_region
      %97 = dma.done [#allocation9], 2048
    $region53: #{tpu_custom_call.1} parent=1 // pred_fallthru
      _
    %v99 = vld [vmem:[#allocation2] sm:$0xff]
    %v100 = vld [vmem:[#allocation2 + $0x8] sm:$0xff]
    %v101 = vld [vmem:[#allocation7] sm:$0xff]
    %v102 = vld [vmem:[#allocation7 + $0x8] sm:$0xff]
    %v103 = vld [vmem:[#allocation7 + $0x10] sm:$0xff]
    %v104 = vld [vmem:[#allocation7 + $0x18] sm:$0xff]
    %v105 = vld [vmem:[#allocation7 + $0x20] sm:$0xff]
    %v106 = vld [vmem:[#allocation7 + $0x28] sm:$0xff]
    %v107 = vld [vmem:[#allocation7 + $0x30] sm:$0xff]
    %v108 = vld [vmem:[#allocation7 + $0x38] sm:$0xff]
    %v109 = vld [vmem:[#allocation7 + $0x40] sm:$0xff]
    %v110 = vld [vmem:[#allocation7 + $0x48] sm:$0xff]
    %v111 = vld [vmem:[#allocation7 + $0x50] sm:$0xff]
    %v112 = vld [vmem:[#allocation7 + $0x58] sm:$0xff]
    %v113 = vld [vmem:[#allocation7 + $0x60] sm:$0xff]
    %v114 = vld [vmem:[#allocation7 + $0x68] sm:$0xff]
    %v115 = vld [vmem:[#allocation7 + $0x70] sm:$0xff]
    %v116 = vld [vmem:[#allocation7 + $0x78] sm:$0xff]
    %v117 = vld [vmem:[#allocation7 + $0x80] sm:$0xff]
    %v118 = vld [vmem:[#allocation7 + $0x88] sm:$0xff]
    %v119 = vld [vmem:[#allocation7 + $0x90] sm:$0xff]
    %v120 = vld [vmem:[#allocation7 + $0x98] sm:$0xff]
    %v121 = vld [vmem:[#allocation7 + $0xa0] sm:$0xff]
    %v122 = vld [vmem:[#allocation7 + $0xa8] sm:$0xff]
    %v123 = vld [vmem:[#allocation7 + $0xb0] sm:$0xff]
    %v124 = vld [vmem:[#allocation7 + $0xb8] sm:$0xff]
    %v125 = vld [vmem:[#allocation7 + $0xc0] sm:$0xff]
    %v126 = vld [vmem:[#allocation7 + $0xc8] sm:$0xff]
    %v127 = vld [vmem:[#allocation7 + $0xd0] sm:$0xff]
    %v128 = vld [vmem:[#allocation7 + $0xd8] sm:$0xff]
    %v129 = vld [vmem:[#allocation7 + $0xe0] sm:$0xff]
    %v130 = vld [vmem:[#allocation7 + $0xe8] sm:$0xff]
    %v131 = vld [vmem:[#allocation7 + $0xf0] sm:$0xff]
    %v132 = vld [vmem:[#allocation7 + $0xf8] sm:$0xff]
    %v133 = vld [vmem:[%s3] sm:$0x3]
    %v135 = vlaneseq
    %v136 = vshrl.u32 %v135, 7
    %v137 = vsub.s32 0, %v136
    %v138 = vrot.slane %v133, %v137
    %v139 = vlaneseq
    %v140 = vshrl.u32 %v139, 7
    %v141 = vsub.s32 1, %v140
    %v142 = vrot.slane %v133, %v141
    %v147 = vunpack.c.l.b16 %v99
    %v148 = vunpack.c.h.b16 %v99
    %v149 = vunpack.c.l.b16 %v100
    %v150 = vunpack.c.h.b16 %v100
    %v151 = vpack.c.b16 %v149, %v147
    %v152 = vpack.c.b16 %v150, %v148
    %v187 = vunpack.c.l.b16 %v101
    %v188 = vunpack.c.h.b16 %v101
    %v189 = vunpack.c.l.b16 %v102
    %v190 = vunpack.c.h.b16 %v102
    %v191 = vunpack.c.l.b16 %v103
    %v192 = vunpack.c.h.b16 %v103
    %v193 = vunpack.c.l.b16 %v104
    %v194 = vunpack.c.h.b16 %v104
    %v195 = vunpack.c.l.b16 %v105
    %v196 = vunpack.c.h.b16 %v105
    %v197 = vunpack.c.l.b16 %v106
    %v198 = vunpack.c.h.b16 %v106
    %v199 = vunpack.c.l.b16 %v107
    %v200 = vunpack.c.h.b16 %v107
    %v201 = vunpack.c.l.b16 %v108
    %v202 = vunpack.c.h.b16 %v108
    %v203 = vunpack.c.l.b16 %v109
    %v204 = vunpack.c.h.b16 %v109
    %v205 = vunpack.c.l.b16 %v110
    %v206 = vunpack.c.h.b16 %v110
    %v207 = vunpack.c.l.b16 %v111
    %v208 = vunpack.c.h.b16 %v111
    %v209 = vunpack.c.l.b16 %v112
    %v210 = vunpack.c.h.b16 %v112
    %v211 = vunpack.c.l.b16 %v113
    %v212 = vunpack.c.h.b16 %v113
    %v213 = vunpack.c.l.b16 %v114
    %v214 = vunpack.c.h.b16 %v114
    %v215 = vunpack.c.l.b16 %v115
    %v216 = vunpack.c.h.b16 %v115
    %v217 = vunpack.c.l.b16 %v116
    %v218 = vunpack.c.h.b16 %v116
    %v219 = vunpack.c.l.b16 %v117
    %v220 = vunpack.c.h.b16 %v117
    %v221 = vunpack.c.l.b16 %v118
    %v222 = vunpack.c.h.b16 %v118
    %v223 = vunpack.c.l.b16 %v119
    %v224 = vunpack.c.h.b16 %v119
    %v225 = vunpack.c.l.b16 %v120
    %v226 = vunpack.c.h.b16 %v120
    %v227 = vunpack.c.l.b16 %v121
    %v228 = vunpack.c.h.b16 %v121
    %v229 = vunpack.c.l.b16 %v122
    %v230 = vunpack.c.h.b16 %v122
    %v231 = vunpack.c.l.b16 %v123
    %v232 = vunpack.c.h.b16 %v123
    %v233 = vunpack.c.l.b16 %v124
    %v234 = vunpack.c.h.b16 %v124
    %v235 = vunpack.c.l.b16 %v125
    %v236 = vunpack.c.h.b16 %v125
    %v237 = vunpack.c.l.b16 %v126
    %v238 = vunpack.c.h.b16 %v126
    %v239 = vunpack.c.l.b16 %v127
    %v240 = vunpack.c.h.b16 %v127
    %v241 = vunpack.c.l.b16 %v128
    %v242 = vunpack.c.h.b16 %v128
    %v243 = vunpack.c.l.b16 %v129
    %v244 = vunpack.c.h.b16 %v129
    %v245 = vunpack.c.l.b16 %v130
    %v246 = vunpack.c.h.b16 %v130
    %v247 = vunpack.c.l.b16 %v131
    %v248 = vunpack.c.h.b16 %v131
    %v249 = vunpack.c.l.b16 %v132
    %v250 = vunpack.c.h.b16 %v132
    %v251 = vpack.c.b16 %v189, %v187
    %v252 = vpack.c.b16 %v190, %v188
    %v253 = vpack.c.b16 %v193, %v191
    %v254 = vpack.c.b16 %v194, %v192
    %v255 = vpack.c.b16 %v197, %v195
    %v256 = vpack.c.b16 %v198, %v196
    %v257 = vpack.c.b16 %v201, %v199
    %v258 = vpack.c.b16 %v202, %v200
    %v259 = vpack.c.b16 %v205, %v203
    %v260 = vpack.c.b16 %v206, %v204
    %v261 = vpack.c.b16 %v209, %v207
    %v262 = vpack.c.b16 %v210, %v208
    %v263 = vpack.c.b16 %v213, %v211
    %v264 = vpack.c.b16 %v214, %v212
    %v265 = vpack.c.b16 %v217, %v215
    %v266 = vpack.c.b16 %v218, %v216
    %v267 = vpack.c.b16 %v221, %v219
    %v268 = vpack.c.b16 %v222, %v220
    %v269 = vpack.c.b16 %v225, %v223
    %v270 = vpack.c.b16 %v226, %v224
    %v271 = vpack.c.b16 %v229, %v227
    %v272 = vpack.c.b16 %v230, %v228
    %v273 = vpack.c.b16 %v233, %v231
    %v274 = vpack.c.b16 %v234, %v232
    %v275 = vpack.c.b16 %v237, %v235
    %v276 = vpack.c.b16 %v238, %v236
    %v277 = vpack.c.b16 %v241, %v239
    %v278 = vpack.c.b16 %v242, %v240
    %v279 = vpack.c.b16 %v245, %v243
    %v280 = vpack.c.b16 %v246, %v244
    %v281 = vpack.c.b16 %v249, %v247
    %v282 = vpack.c.b16 %v250, %v248
    %315 = vmatprep.subr.bf16.mxu0 %v252
    %316 = vmatpush1.bf16.msra.mxu0 %v251
    %317 = vmatprep.subr.bf16.mxu0 %v254
    %318 = vmatpush1.bf16.msra.mxu0 %v253
    %319 = vmatprep.subr.bf16.mxu0 %v256
    %320 = vmatpush1.bf16.msra.mxu0 %v255
    %321 = vmatprep.subr.bf16.mxu0 %v258
    %322 = vmatpush1.bf16.msra.mxu0 %v257
    %323 = vmatprep.subr.bf16.mxu0 %v260
    %324 = vmatpush1.bf16.msra.mxu0 %v259
    %325 = vmatprep.subr.bf16.mxu0 %v262
    %326 = vmatpush1.bf16.msra.mxu0 %v261
    %327 = vmatprep.subr.bf16.mxu0 %v264
    %328 = vmatpush1.bf16.msra.mxu0 %v263
    %329 = vmatprep.subr.bf16.mxu0 %v266
    %330 = vmatpush1.bf16.msra.mxu0 %v265
    %331 = vmatprep.subr.bf16.mxu0 %v268
    %332 = vmatpush1.bf16.msra.mxu0 %v267
    %333 = vmatprep.subr.bf16.mxu0 %v270
    %334 = vmatpush1.bf16.msra.mxu0 %v269
    %335 = vmatprep.subr.bf16.mxu0 %v272
    %336 = vmatpush1.bf16.msra.mxu0 %v271
    %337 = vmatprep.subr.bf16.mxu0 %v274
    %338 = vmatpush1.bf16.msra.mxu0 %v273
    %339 = vmatprep.subr.bf16.mxu0 %v276
    %340 = vmatpush1.bf16.msra.mxu0 %v275
    %341 = vmatprep.subr.bf16.mxu0 %v278
    %342 = vmatpush1.bf16.msra.mxu0 %v277
    %343 = vmatprep.subr.bf16.mxu0 %v280
    %344 = vmatpush1.bf16.msra.mxu0 %v279
    %345 = vmatprep.subr.bf16.mxu0 %v282
    %346 = vmatpush1.bf16.msra.mxu0 %v281
    %347 = vmatprep.mubr.bf16.mxu0 %v152
    %348 = vmatmul.mubr.bf16.gmra.mrb[0].mxu0 %v151
    %v349 = vpop.f32.mrb[0].mxu0
    %v350 = vadd.f32 %v138, %v349
    %v351 = vpop.f32.mrb[0].mxu0
    %v352 = vadd.f32 %v142, %v351
    %v353 = vpop.f32.mrb[0].mxu0
    %v354 = vadd.f32 %v138, %v353
    %v355 = vpop.f32.mrb[0].mxu0
    %v356 = vadd.f32 %v142, %v355
    %357 = vdwg.mxu0
    %v358 = vmax.f32 %v350, 0.0
    %v359 = vmax.f32 %v352, 0.0
    %v360 = vmax.f32 %v354, 0.0
    %v361 = vmax.f32 %v356, 0.0
    %v362 = vpack.c.bf16 %v360, %v358
    %v363 = vpack.c.bf16 %v361, %v359
    %v364 = vld [vmem:[#allocation8] sm:$0xff]
    %v365 = vld [vmem:[#allocation8 + $0x8] sm:$0xff]
    %v366 = vld [vmem:[#allocation8 + $0x10] sm:$0xff]
    %v367 = vld [vmem:[#allocation8 + $0x18] sm:$0xff]
    %v368 = vld [vmem:[#allocation8 + $0x20] sm:$0xff]
    %v369 = vld [vmem:[#allocation8 + $0x28] sm:$0xff]
    %v370 = vld [vmem:[#allocation8 + $0x30] sm:$0xff]
    %v371 = vld [vmem:[#allocation8 + $0x38] sm:$0xff]
    %v372 = vld [vmem:[#allocation8 + $0x40] sm:$0xff]
    %v373 = vld [vmem:[#allocation8 + $0x48] sm:$0xff]
    %v374 = vld [vmem:[#allocation8 + $0x50] sm:$0xff]
    %v375 = vld [vmem:[#allocation8 + $0x58] sm:$0xff]
    %v376 = vld [vmem:[#allocation8 + $0x60] sm:$0xff]
    %v377 = vld [vmem:[#allocation8 + $0x68] sm:$0xff]
    %v378 = vld [vmem:[#allocation8 + $0x70] sm:$0xff]
    %v379 = vld [vmem:[#allocation8 + $0x78] sm:$0xff]
    %v380 = vld [vmem:[#allocation8 + $0x80] sm:$0xff]
    %v381 = vld [vmem:[#allocation8 + $0x88] sm:$0xff]
    %v382 = vld [vmem:[#allocation8 + $0x90] sm:$0xff]
    %v383 = vld [vmem:[#allocation8 + $0x98] sm:$0xff]
    %v384 = vld [vmem:[#allocation8 + $0xa0] sm:$0xff]
    %v385 = vld [vmem:[#allocation8 + $0xa8] sm:$0xff]
    %v386 = vld [vmem:[#allocation8 + $0xb0] sm:$0xff]
    %v387 = vld [vmem:[#allocation8 + $0xb8] sm:$0xff]
    %v388 = vld [vmem:[#allocation8 + $0xc0] sm:$0xff]
    %v389 = vld [vmem:[#allocation8 + $0xc8] sm:$0xff]
    %v390 = vld [vmem:[#allocation8 + $0xd0] sm:$0xff]
    %v391 = vld [vmem:[#allocation8 + $0xd8] sm:$0xff]
    %v392 = vld [vmem:[#allocation8 + $0xe0] sm:$0xff]
    %v393 = vld [vmem:[#allocation8 + $0xe8] sm:$0xff]
    %v394 = vld [vmem:[#allocation8 + $0xf0] sm:$0xff]
    %v395 = vld [vmem:[#allocation8 + $0xf8] sm:$0xff]
    %v396 = vld [vmem:[%s5] sm:$0x3]
    %v398 = vlaneseq
    %v399 = vshrl.u32 %v398, 7
    %v400 = vsub.s32 0, %v399
    %v401 = vrot.slane %v396, %v400
    %v402 = vlaneseq
    %v403 = vshrl.u32 %v402, 7
    %v404 = vsub.s32 1, %v403
    %v405 = vrot.slane %v396, %v404
    %v440 = vunpack.c.l.b16 %v364
    %v441 = vunpack.c.h.b16 %v364
    %v442 = vunpack.c.l.b16 %v365
    %v443 = vunpack.c.h.b16 %v365
    %v444 = vunpack.c.l.b16 %v366
    %v445 = vunpack.c.h.b16 %v366
    %v446 = vunpack.c.l.b16 %v367
    %v447 = vunpack.c.h.b16 %v367
    %v448 = vunpack.c.l.b16 %v368
    %v449 = vunpack.c.h.b16 %v368
    %v450 = vunpack.c.l.b16 %v369
    %v451 = vunpack.c.h.b16 %v369
    %v452 = vunpack.c.l.b16 %v370
    %v453 = vunpack.c.h.b16 %v370
    %v454 = vunpack.c.l.b16 %v371
    %v455 = vunpack.c.h.b16 %v371
    %v456 = vunpack.c.l.b16 %v372
    %v457 = vunpack.c.h.b16 %v372
    %v458 = vunpack.c.l.b16 %v373
    %v459 = vunpack.c.h.b16 %v373
    %v460 = vunpack.c.l.b16 %v374
    %v461 = vunpack.c.h.b16 %v374
    %v462 = vunpack.c.l.b16 %v375
    %v463 = vunpack.c.h.b16 %v375
    %v464 = vunpack.c.l.b16 %v376
    %v465 = vunpack.c.h.b16 %v376
    %v466 = vunpack.c.l.b16 %v377
    %v467 = vunpack.c.h.b16 %v377
    %v468 = vunpack.c.l.b16 %v378
    %v469 = vunpack.c.h.b16 %v378
    %v470 = vunpack.c.l.b16 %v379
    %v471 = vunpack.c.h.b16 %v379
    %v472 = vunpack.c.l.b16 %v380
    %v473 = vunpack.c.h.b16 %v380
    %v474 = vunpack.c.l.b16 %v381
    %v475 = vunpack.c.h.b16 %v381
    %v476 = vunpack.c.l.b16 %v382
    %v477 = vunpack.c.h.b16 %v382
    %v478 = vunpack.c.l.b16 %v383
    %v479 = vunpack.c.h.b16 %v383
    %v480 = vunpack.c.l.b16 %v384
    %v481 = vunpack.c.h.b16 %v384
    %v482 = vunpack.c.l.b16 %v385
    %v483 = vunpack.c.h.b16 %v385
    %v484 = vunpack.c.l.b16 %v386
    %v485 = vunpack.c.h.b16 %v386
    %v486 = vunpack.c.l.b16 %v387
    %v487 = vunpack.c.h.b16 %v387
    %v488 = vunpack.c.l.b16 %v388
    %v489 = vunpack.c.h.b16 %v388
    %v490 = vunpack.c.l.b16 %v389
    %v491 = vunpack.c.h.b16 %v389
    %v492 = vunpack.c.l.b16 %v390
    %v493 = vunpack.c.h.b16 %v390
    %v494 = vunpack.c.l.b16 %v391
    %v495 = vunpack.c.h.b16 %v391
    %v496 = vunpack.c.l.b16 %v392
    %v497 = vunpack.c.h.b16 %v392
    %v498 = vunpack.c.l.b16 %v393
    %v499 = vunpack.c.h.b16 %v393
    %v500 = vunpack.c.l.b16 %v394
    %v501 = vunpack.c.h.b16 %v394
    %v502 = vunpack.c.l.b16 %v395
    %v503 = vunpack.c.h.b16 %v395
    %v504 = vpack.c.b16 %v442, %v440
    %v505 = vpack.c.b16 %v443, %v441
    %v506 = vpack.c.b16 %v446, %v444
    %v507 = vpack.c.b16 %v447, %v445
    %v508 = vpack.c.b16 %v450, %v448
    %v509 = vpack.c.b16 %v451, %v449
    %v510 = vpack.c.b16 %v454, %v452
    %v511 = vpack.c.b16 %v455, %v453
    %v512 = vpack.c.b16 %v458, %v456
    %v513 = vpack.c.b16 %v459, %v457
    %v514 = vpack.c.b16 %v462, %v460
    %v515 = vpack.c.b16 %v463, %v461
    %v516 = vpack.c.b16 %v466, %v464
    %v517 = vpack.c.b16 %v467, %v465
    %v518 = vpack.c.b16 %v470, %v468
    %v519 = vpack.c.b16 %v471, %v469
    %v520 = vpack.c.b16 %v474, %v472
    %v521 = vpack.c.b16 %v475, %v473
    %v522 = vpack.c.b16 %v478, %v476
    %v523 = vpack.c.b16 %v479, %v477
    %v524 = vpack.c.b16 %v482, %v480
    %v525 = vpack.c.b16 %v483, %v481
    %v526 = vpack.c.b16 %v486, %v484
    %v527 = vpack.c.b16 %v487, %v485
    %v528 = vpack.c.b16 %v490, %v488
    %v529 = vpack.c.b16 %v491, %v489
    %v530 = vpack.c.b16 %v494, %v492
    %v531 = vpack.c.b16 %v495, %v493
    %v532 = vpack.c.b16 %v498, %v496
    %v533 = vpack.c.b16 %v499, %v497
    %v534 = vpack.c.b16 %v502, %v500
    %v535 = vpack.c.b16 %v503, %v501
    %568 = vmatprep.subr.bf16.mxu0 %v505
    %569 = vmatpush1.bf16.msra.mxu0 %v504
    %570 = vmatprep.subr.bf16.mxu0 %v507
    %571 = vmatpush1.bf16.msra.mxu0 %v506
    %572 = vmatprep.subr.bf16.mxu0 %v509
    %573 = vmatpush1.bf16.msra.mxu0 %v508
    %574 = vmatprep.subr.bf16.mxu0 %v511
    %575 = vmatpush1.bf16.msra.mxu0 %v510
    %576 = vmatprep.subr.bf16.mxu0 %v513
    %577 = vmatpush1.bf16.msra.mxu0 %v512
    %578 = vmatprep.subr.bf16.mxu0 %v515
    %579 = vmatpush1.bf16.msra.mxu0 %v514
    %580 = vmatprep.subr.bf16.mxu0 %v517
    %581 = vmatpush1.bf16.msra.mxu0 %v516
    %582 = vmatprep.subr.bf16.mxu0 %v519
    %583 = vmatpush1.bf16.msra.mxu0 %v518
    %584 = vmatprep.subr.bf16.mxu0 %v521
    %585 = vmatpush1.bf16.msra.mxu0 %v520
    %586 = vmatprep.subr.bf16.mxu0 %v523
    %587 = vmatpush1.bf16.msra.mxu0 %v522
    %588 = vmatprep.subr.bf16.mxu0 %v525
    %589 = vmatpush1.bf16.msra.mxu0 %v524
    %590 = vmatprep.subr.bf16.mxu0 %v527
    %591 = vmatpush1.bf16.msra.mxu0 %v526
    %592 = vmatprep.subr.bf16.mxu0 %v529
    %593 = vmatpush1.bf16.msra.mxu0 %v528
    %594 = vmatprep.subr.bf16.mxu0 %v531
    %595 = vmatpush1.bf16.msra.mxu0 %v530
    %596 = vmatprep.subr.bf16.mxu0 %v533
    %597 = vmatpush1.bf16.msra.mxu0 %v532
    %598 = vmatprep.subr.bf16.mxu0 %v535
    %599 = vmatpush1.bf16.msra.mxu0 %v534
    %600 = vmatprep.mubr.bf16.mxu0 %v363
    %601 = vmatmul.mubr.bf16.gmra.mrb[0].mxu0 %v362
    %v602 = vpop.f32.mrb[0].mxu0
    %v603 = vadd.f32 %v401, %v602
    %v604 = vpop.f32.mrb[0].mxu0
    %v605 = vadd.f32 %v405, %v604
    %v606 = vpop.f32.mrb[0].mxu0
    %v607 = vadd.f32 %v401, %v606
    %v608 = vpop.f32.mrb[0].mxu0
    %v609 = vadd.f32 %v405, %v608
    %610 = vdwg.mxu0
    %v611 = vmax.f32 %v603, 0.0
    %v612 = vmax.f32 %v605, 0.0
    %v613 = vmax.f32 %v607, 0.0
    %v614 = vmax.f32 %v609, 0.0
    %v615 = vld [vmem:[#allocation5] sm:$0xff]
    %v616 = vld [vmem:[#allocation5 + $0x8] sm:$0xff]
    %v617 = vunpack.c.l.bf16 %v615
    %v618 = vunpack.c.h.bf16 %v615
    %v619 = vunpack.c.l.bf16 %v616
    %v620 = vunpack.c.h.bf16 %v616
    %v621 = vmul.f32 %v611, %v617
    %v622 = vmul.f32 %v612, %v618
    %v623 = vmul.f32 %v613, %v619
    %v624 = vmul.f32 %v614, %v620
    %v625 = vpack.c.bf16 %v623, %v621
    %v626 = vpack.c.bf16 %v624, %v622
    %v627 = vld [vmem:[#allocation10] sm:$0xf]
    %v628 = vld [vmem:[#allocation10 + $0x4] sm:$0xf]
    %v629 = vld [vmem:[#allocation10 + $0x8] sm:$0xf]
    %v630 = vld [vmem:[#allocation10 + $0xc] sm:$0xf]
    %v631 = vld [vmem:[#allocation10 + $0x10] sm:$0xf]
    %v632 = vld [vmem:[#allocation10 + $0x14] sm:$0xf]
    %v633 = vld [vmem:[#allocation10 + $0x18] sm:$0xf]
    %v634 = vld [vmem:[#allocation10 + $0x1c] sm:$0xf]
    %v635 = vld [vmem:[#allocation10 + $0x20] sm:$0xf]
    %v636 = vld [vmem:[#allocation10 + $0x24] sm:$0xf]
    %v637 = vld [vmem:[#allocation10 + $0x28] sm:$0xf]
    %v638 = vld [vmem:[#allocation10 + $0x2c] sm:$0xf]
    %v639 = vld [vmem:[#allocation10 + $0x30] sm:$0xf]
    %v640 = vld [vmem:[#allocation10 + $0x34] sm:$0xf]
    %v641 = vld [vmem:[#allocation10 + $0x38] sm:$0xf]
    %v642 = vld [vmem:[#allocation10 + $0x3c] sm:$0xf]
    %v643 = vld [vmem:[#allocation10 + $0x40] sm:$0xf]
    %v644 = vld [vmem:[#allocation10 + $0x44] sm:$0xf]
    %v645 = vld [vmem:[#allocation10 + $0x48] sm:$0xf]
    %v646 = vld [vmem:[#allocation10 + $0x4c] sm:$0xf]
    %v647 = vld [vmem:[#allocation10 + $0x50] sm:$0xf]
    %v648 = vld [vmem:[#allocation10 + $0x54] sm:$0xf]
    %v649 = vld [vmem:[#allocation10 + $0x58] sm:$0xf]
    %v650 = vld [vmem:[#allocation10 + $0x5c] sm:$0xf]
    %v651 = vld [vmem:[#allocation10 + $0x60] sm:$0xf]
    %v652 = vld [vmem:[#allocation10 + $0x64] sm:$0xf]
    %v653 = vld [vmem:[#allocation10 + $0x68] sm:$0xf]
    %v654 = vld [vmem:[#allocation10 + $0x6c] sm:$0xf]
    %v655 = vld [vmem:[#allocation10 + $0x70] sm:$0xf]
    %v656 = vld [vmem:[#allocation10 + $0x74] sm:$0xf]
    %v657 = vld [vmem:[#allocation10 + $0x78] sm:$0xf]
    %v658 = vld [vmem:[#allocation10 + $0x7c] sm:$0xf]
    %v659 = vld [vmem:[%s7] sm:$0x1]
    %v661 = vlaneseq
    %v662 = vshrl.u32 %v661, 7
    %v663 = vsub.s32 0, %v662
    %v664 = vrot.slane %v659, %v663
    %v698 = vunpack.c.l.b16 %v627
    %v699 = vunpack.c.l.b16 %v628
    %v700 = vunpack.c.l.b16 %v629
    %v701 = vunpack.c.l.b16 %v630
    %v702 = vunpack.c.l.b16 %v631
    %v703 = vunpack.c.l.b16 %v632
    %v704 = vunpack.c.l.b16 %v633
    %v705 = vunpack.c.l.b16 %v634
    %v706 = vunpack.c.l.b16 %v635
    %v707 = vunpack.c.l.b16 %v636
    %v708 = vunpack.c.l.b16 %v637
    %v709 = vunpack.c.l.b16 %v638
    %v710 = vunpack.c.l.b16 %v639
    %v711 = vunpack.c.l.b16 %v640
    %v712 = vunpack.c.l.b16 %v641
    %v713 = vunpack.c.l.b16 %v642
    %v714 = vunpack.c.l.b16 %v643
    %v715 = vunpack.c.l.b16 %v644
    %v716 = vunpack.c.l.b16 %v645
    %v717 = vunpack.c.l.b16 %v646
    %v718 = vunpack.c.l.b16 %v647
    %v719 = vunpack.c.l.b16 %v648
    %v720 = vunpack.c.l.b16 %v649
    %v721 = vunpack.c.l.b16 %v650
    %v722 = vunpack.c.l.b16 %v651
    %v723 = vunpack.c.l.b16 %v652
    %v724 = vunpack.c.l.b16 %v653
    %v725 = vunpack.c.l.b16 %v654
    %v726 = vunpack.c.l.b16 %v655
    %v727 = vunpack.c.l.b16 %v656
    %v728 = vunpack.c.l.b16 %v657
    %v729 = vunpack.c.l.b16 %v658
    %v730 = vpack.c.b16 %v699, %v698
    %v731 = vpack.c.b16 %v701, %v700
    %v732 = vpack.c.b16 %v703, %v702
    %v733 = vpack.c.b16 %v705, %v704
    %v734 = vpack.c.b16 %v707, %v706
    %v735 = vpack.c.b16 %v709, %v708
    %v736 = vpack.c.b16 %v711, %v710
    %v737 = vpack.c.b16 %v713, %v712
    %v738 = vpack.c.b16 %v715, %v714
    %v739 = vpack.c.b16 %v717, %v716
    %v740 = vpack.c.b16 %v719, %v718
    %v741 = vpack.c.b16 %v721, %v720
    %v742 = vpack.c.b16 %v723, %v722
    %v743 = vpack.c.b16 %v725, %v724
    %v744 = vpack.c.b16 %v727, %v726
    %v745 = vpack.c.b16 %v729, %v728
    %762 = vmatprep.subr.bf16.mxu0 0
    %763 = vmatpush1.bf16.msra.mxu0 %v730
    %764 = vmatprep.subr.bf16.mxu0 0
    %765 = vmatpush1.bf16.msra.mxu0 %v731
    %766 = vmatprep.subr.bf16.mxu0 0
    %767 = vmatpush1.bf16.msra.mxu0 %v732
    %768 = vmatprep.subr.bf16.mxu0 0
    %769 = vmatpush1.bf16.msra.mxu0 %v733
    %770 = vmatprep.subr.bf16.mxu0 0
    %771 = vmatpush1.bf16.msra.mxu0 %v734
    %772 = vmatprep.subr.bf16.mxu0 0
    %773 = vmatpush1.bf16.msra.mxu0 %v735
    %774 = vmatprep.subr.bf16.mxu0 0
    %775 = vmatpush1.bf16.msra.mxu0 %v736
    %776 = vmatprep.subr.bf16.mxu0 0
    %777 = vmatpush1.bf16.msra.mxu0 %v737
    %778 = vmatprep.subr.bf16.mxu0 0
    %779 = vmatpush1.bf16.msra.mxu0 %v738
    %780 = vmatprep.subr.bf16.mxu0 0
    %781 = vmatpush1.bf16.msra.mxu0 %v739
    %782 = vmatprep.subr.bf16.mxu0 0
    %783 = vmatpush1.bf16.msra.mxu0 %v740
    %784 = vmatprep.subr.bf16.mxu0 0
    %785 = vmatpush1.bf16.msra.mxu0 %v741
    %786 = vmatprep.subr.bf16.mxu0 0
    %787 = vmatpush1.bf16.msra.mxu0 %v742
    %788 = vmatprep.subr.bf16.mxu0 0
    %789 = vmatpush1.bf16.msra.mxu0 %v743
    %790 = vmatprep.subr.bf16.mxu0 0
    %791 = vmatpush1.bf16.msra.mxu0 %v744
    %792 = vmatprep.subr.bf16.mxu0 0
    %793 = vmatpush1.bf16.msra.mxu0 %v745
    %794 = vmatprep.mubr.bf16.mxu0 %v626
    %795 = vmatmul.mubr.bf16.gmra.mrb[0].mxu0 %v625
    %v796 = vpop.f32.mrb[0].mxu0
    %v797 = vadd.f32 %v664, %v796
    %v798 = vpop.f32.mrb[0].mxu0
    %v799 = vpop.f32.mrb[0].mxu0
    %v800 = vadd.f32 %v664, %v799
    %v801 = vpop.f32.mrb[0].mxu0
    %802 = vdwg.mxu0
    %803 = vst [vmem:[#allocation11] sm:$0xff] %v797
    %804 = vst [vmem:[#allocation11 + $0x8] sm:$0xff] %v800
    // Predicated region
    $region54: #{tpu_custom_call.1} parent=1 // pred_check
      _
    $region55: #{tpu_custom_call.1} parent=1 // pred_check_branch
      %806 = sbr.rel (0) target = $region57
    $region56: #{tpu_custom_call.1} parent=1 // pred_region
      %s808 = ssub.s32 256, 256
      %809 = vsyncadd [#allocation4], %s808
      %s810 = sshll.u32 [#allocation11], 4
      %s811 = int_to_ptr.vmem [resolvable:$true] %s810
      %816 = dma.vmem_to_hbm [thread:$0]  %s811, 256, %s8, [#allocation4], 128, 128, 8
    $region57: #{tpu_custom_call.1} parent=1 // pred_fallthru
      _
    // Predicated region
    $region58: #{tpu_custom_call.1} parent=1 // pred_check
      _
    $region59: #{tpu_custom_call.1} parent=1 // pred_check_branch
      %818 = sbr.rel (0) target = $region61
    $region60: #{tpu_custom_call.1} parent=1 // pred_region
      %819 = dma.done [#allocation4], 256
    $region61: #{tpu_custom_call.1} parent=1 // pred_fallthru
      _
    %820 = vsyncpa [#allocation3], 1
    %821 = vsyncpa [#allocation6], 1
    %822 = vsyncpa [#allocation9], 1
    %823 = vsyncpa [#allocation4], 1

</llo_original>
